<compile_context>
chip_gen: v6e
topology: v6e:2x2x1
jax: 0.10.0
libtpu: 0.0.40
codegen_flags: <defaults>
</compile_context>

<pallas_src>
import functools
import math

import numpy as np
import jax
import jax.numpy as jnp
from jax.experimental import pallas as pl
from jax.experimental.pallas import tpu as pltpu


# ------------------------------ in-kernel rolls -------------------------------

def _roll_concat_2d(v, shift, axis):
    """out[i] = v[(i - shift) mod n] (jnp.roll semantics); static shift in [0, n).

    Fallback path for tiles that are not vreg-aligned (pltpu.roll lowering
    requires aligned 2-D 32-bit tiles)."""
    n = v.shape[axis]
    if shift == 0 or n == 1:
        return v
    lo = jax.lax.slice_in_dim(v, n - shift, n, axis=axis)
    hi = jax.lax.slice_in_dim(v, 0, n - shift, axis=axis)
    return jax.lax.concatenate([lo, hi], dimension=axis)


def _roll_xlu_2d(v, shift, axis):
    """XLU sublane/lane rotate. pltpu.roll matches jnp.roll semantics."""
    if shift == 0 or v.shape[axis] == 1:
        return v
    return pltpu.roll(v, shift, axis)


def _shift_kernel(x_ref, o_ref, *, tx, dy, dzc, use_xlu_roll):
    # Block shape: (1, tx, Y, Z*C). The X roll was already applied by the
    # input BlockSpec index_map, so only Y and Z rolls happen here.
    roll2d = _roll_xlu_2d if use_xlu_roll else _roll_concat_2d
    for t in range(tx):                      # static unroll; tx is kept small
        v = x_ref[0, t]                      # (Y, Z*C) 2-D tile
        v = roll2d(v, dy, 0)                 # Y roll  -> sublane rotate
        v = roll2d(v, dzc, 1)                # Z roll  -> lane rotate by dz*C
        o_ref[0, t] = v


# --------------------------------- wrapper ------------------------------------

def _normalize_displacement(displacement, sizes):
    if isinstance(displacement, (int, np.integer)):
        disp = [int(displacement)] * 3
    else:
        disp = [int(d) for d in displacement]
        assert len(disp) == 3, "displacement must be 1 or 3 dimension"
    return tuple(d % s for d, s in zip(disp, sizes))   # Python %: result in [0, s)


def _choose_x_tile(X, dx, row_bytes, B, block_budget_bytes,
                   min_grid_steps=4, max_unroll=32):
    """Largest X tile that (a) divides X, (b) keeps the X roll expressible as a
    block-index shift (tx | dx), (c) fits the per-block VMEM budget and
    (d) leaves enough parallel grid steps for megacore + pipelining."""
    g = math.gcd(X, dx) if dx else X
    divisors = sorted((d for d in range(1, g + 1) if g % d == 0), reverse=True)
    divisors = [d for d in divisors if d <= max_unroll] or [1]
    for tx in divisors:
        if tx * row_bytes <= block_budget_bytes and B * (X // tx) >= min_grid_steps:
            return tx
    for tx in divisors:
        if tx * row_bytes <= block_budget_bytes:
            return tx
    return 1


def cyclic_shift_3d(x, displacement, *, block_budget_bytes=None):
    """CyclicShift3D.forward: cyclic roll of dims (1, 2, 3).

    x: (B, X, Y, Z, C) channels-last (SwinUnet layout) or (B, X, Y, Z).
    displacement: int or length-3 sequence (may be negative).
    """
    squeeze_c = (x.ndim == 4)
    if squeeze_c:
        x = x[..., None]
    assert x.ndim == 5, "expected (B, X, Y, Z[, C])"
    B, X, Y, Z, C = x.shape

    dx, dy, dz = _normalize_displacement(displacement, (X, Y, Z))
    ZC = Z * C
    dzc = dz * C                               # Z roll on the flattened lane axis

    xf = x.reshape(B, X, Y, ZC)                # lane-dense trailing dim
    itemsize = xf.dtype.itemsize
    row_bytes = Y * ZC * itemsize

    # Per-generation sizing: query physical VMEM and derive block budget +
    # explicit scoped limit (v5e/v6e: 128 MiB -> 8 MiB blocks; v7x: 64 MiB ->
    # 4 MiB blocks).
    try:
        vmem_cap = int(pltpu.get_tpu_info().vmem_capacity_bytes)
    except Exception:                           # pragma: no cover - conservative
        vmem_cap = 64 << 20
    if block_budget_bytes is None:
        block_budget_bytes = max(256 << 10, min(8 << 20, vmem_cap // 16))

    tx = _choose_x_tile(X, dx, row_bytes, B, block_budget_bytes)
    nxb = X // tx
    dxb = dx // tx                              # block-granular X shift
    block_bytes = tx * row_bytes
    # ~ double-buffered (in + out) blocks + roll temporaries, with headroom.
    vmem_limit = int(min(vmem_cap // 2, max(16 << 20, 6 * block_bytes)))

    # Fast XLU-rotate path only when the (Y, ZC) tile is vreg-aligned.
    use_xlu_roll = (itemsize == 4) and (Y % 8 == 0) and (ZC % 128 == 0)

    kernel = functools.partial(_shift_kernel, tx=tx, dy=dy, dzc=dzc,
                               use_xlu_roll=use_xlu_roll)

    out = pl.pallas_call(
        kernel,
        out_shape=jax.ShapeDtypeStruct(xf.shape, xf.dtype),
        grid=(B, nxb),
        in_specs=[pl.BlockSpec(
            (1, tx, Y, ZC),
            # X roll = pure index arithmetic on the DMA side.
            lambda b, i: (b, (i + nxb - dxb) % nxb, 0, 0))],
        out_specs=pl.BlockSpec((1, tx, Y, ZC), lambda b, i: (b, i, 0, 0)),
        compiler_params=pltpu.CompilerParams(
            dimension_semantics=("parallel", "parallel"),
            vmem_limit_bytes=vmem_limit),
    )(xf)

    out = out.reshape(B, X, Y, Z, C)
    if squeeze_c:
        out = out[..., 0]
    return out


# ----------------------------------- main --------------------------------------

if __name__ == "__main__":
    key = jax.random.PRNGKey(0)
    # SwinUnet-style channels-last volume; Z*C = 128 -> lane-dense, vreg-aligned.
    B, X, Y, Z, C = 2, 8, 8, 8, 16
    x = jax.random.normal(key, (B, X, Y, Z, C), jnp.float32)

    # Case 1: scalar displacement (as in CyclicShift3D(-window_size // 2)).
    # dx = 6 -> gcd(8, 6) = 2 -> X tile of 2, grid = (2, 4), XLU-roll path.
    disp_int = -2
    fwd = jax.jit(functools.partial(cyclic_shift_3d, displacement=disp_int))
    out1 = jax.block_until_ready(fwd(x))
    ref1 = jnp.roll(x, shift=(disp_int, disp_int, disp_int), axis=(1, 2, 3))
    assert out1.shape == x.shape, out1.shape
    assert bool(jnp.array_equal(out1, ref1)), "scalar-displacement roll mismatch"

    # Case 2: mixed-sign 3-vector displacement.
    # dx = 3 -> gcd(8, 3) = 1 -> X tile of 1, grid = (2, 8), XLU-roll path.
    disp_vec = (3, -2, 5)
    out2 = jax.block_until_ready(cyclic_shift_3d(x, disp_vec))
    ref2 = jnp.roll(x, shift=disp_vec, axis=(1, 2, 3))
    assert bool(jnp.array_equal(out2, ref2)), "vector-displacement roll mismatch"

    print("KERNEL_OK")
</pallas_src>

<mosaic_0001>
module attributes {stable_mosaic.version = 11 : i64} {
  func.func @_shift_kernel(%arg0: i32, %arg1: i32, %arg2: memref<1x2x8x128xf32, #tpu.memory_space<vmem>>, %arg3: memref<1x2x8x128xf32, #tpu.memory_space<vmem>>) attributes {dimension_semantics = [#tpu.dimension_semantics<parallel>, #tpu.dimension_semantics<parallel>], iteration_bounds = array<i64: 2, 4>, scalar_prefetch = 0 : i64, scratch_operands = 0 : i64, tpu.core_type = #tpu.core_type<tc>, window_params = [{transform_indices = @transform_0, window_bounds = array<i64: 1, 2, 8, 128>}, {transform_indices = @transform_1, window_bounds = array<i64: 1, 2, 8, 128>}]} {
    %c0 = arith.constant 0 : index
    %c0_0 = arith.constant 0 : index
    %c0_1 = arith.constant 0 : index
    %c0_2 = arith.constant 0 : index
    %0 = vector.load %arg2[%c0, %c0_0, %c0_1, %c0_2] : memref<1x2x8x128xf32, #tpu.memory_space<vmem>>, vector<1x1x8x128xf32>
    %1 = vector.shape_cast %0 : vector<1x1x8x128xf32> to vector<8x128xf32>
    %c6_i32 = arith.constant 6 : i32
    %2 = tpu.dynamic_rotate %1 by %c6_i32 dim 0 : vector<8x128xf32>, i32 -> vector<8x128xf32>
    %c96_i32 = arith.constant 96 : i32
    %3 = tpu.dynamic_rotate %2 by %c96_i32 dim 1 : vector<8x128xf32>, i32 -> vector<8x128xf32>
    %c0_3 = arith.constant 0 : index
    %c0_4 = arith.constant 0 : index
    %c0_5 = arith.constant 0 : index
    %c0_6 = arith.constant 0 : index
    %4 = vector.load %arg3[%c0_3, %c0_4, %c0_5, %c0_6] : memref<1x2x8x128xf32, #tpu.memory_space<vmem>>, vector<1x1x8x128xf32>
    %5 = vector.shape_cast %4 : vector<1x1x8x128xf32> to vector<8x128xf32>
    %6 = vector.shape_cast %3 : vector<8x128xf32> to vector<1x1x8x128xf32>
    tpu.vector_store %arg3[%c0_3, %c0_4, %c0_5, %c0_6], %6 {strides = array<i32>} : memref<1x2x8x128xf32, #tpu.memory_space<vmem>>, vector<1x1x8x128xf32>,
    %c0_7 = arith.constant 0 : index
    %c1 = arith.constant 1 : index
    %c0_8 = arith.constant 0 : index
    %c0_9 = arith.constant 0 : index
    %7 = vector.load %arg2[%c0_7, %c1, %c0_8, %c0_9] : memref<1x2x8x128xf32, #tpu.memory_space<vmem>>, vector<1x1x8x128xf32>
    %8 = vector.shape_cast %7 : vector<1x1x8x128xf32> to vector<8x128xf32>
    %c6_i32_10 = arith.constant 6 : i32
    %9 = tpu.dynamic_rotate %8 by %c6_i32_10 dim 0 : vector<8x128xf32>, i32 -> vector<8x128xf32>
    %c96_i32_11 = arith.constant 96 : i32
    %10 = tpu.dynamic_rotate %9 by %c96_i32_11 dim 1 : vector<8x128xf32>, i32 -> vector<8x128xf32>
    %c0_12 = arith.constant 0 : index
    %c1_13 = arith.constant 1 : index
    %c0_14 = arith.constant 0 : index
    %c0_15 = arith.constant 0 : index
    %11 = vector.load %arg3[%c0_12, %c1_13, %c0_14, %c0_15] : memref<1x2x8x128xf32, #tpu.memory_space<vmem>>, vector<1x1x8x128xf32>
    %12 = vector.shape_cast %11 : vector<1x1x8x128xf32> to vector<8x128xf32>
    %13 = vector.shape_cast %10 : vector<8x128xf32> to vector<1x1x8x128xf32>
    tpu.vector_store %arg3[%c0_12, %c1_13, %c0_14, %c0_15], %13 {strides = array<i32>} : memref<1x2x8x128xf32, #tpu.memory_space<vmem>>, vector<1x1x8x128xf32>,
    return
  }
  func.func @transform_0(%arg0: i32, %arg1: i32) -> (i32, i32, i32, i32) {
    %c4_i32 = arith.constant 4 : i32
    %0 = arith.addi %arg1, %c4_i32 : i32
    %c3_i32 = arith.constant 3 : i32
    %1 = arith.subi %0, %c3_i32 : i32
    %c4_i32_0 = arith.constant 4 : i32
    %c0_i32 = arith.constant 0 : i32
    %2 = arith.cmpi eq, %c4_i32_0, %c0_i32 : i32
    %c1_i32 = arith.constant 1 : i32
    %3 = arith.select %2, %c1_i32, %c4_i32_0 : i32
    %4 = arith.remsi %1, %3 : i32
    %c0_i32_1 = arith.constant 0 : i32
    %5 = arith.cmpi ne, %4, %c0_i32_1 : i32
    %c0_i32_2 = arith.constant 0 : i32
    %6 = arith.cmpi slt, %4, %c0_i32_2 : i32
    %c0_i32_3 = arith.constant 0 : i32
    %7 = arith.cmpi slt, %3, %c0_i32_3 : i32
    %8 = arith.xori %6, %7 : i1
    %9 = arith.andi %8, %5 : i1
    %10 = arith.addi %4, %3 : i32
    %11 = arith.select %9, %10, %4 : i32
    %c0_i32_4 = arith.constant 0 : i32
    %c0_i32_5 = arith.constant 0 : i32
    %c0_i32_6 = arith.constant 0 : i32
    return %arg0, %11, %c0_i32_4, %c0_i32_5 : i32, i32, i32, i32
  }
  func.func @transform_1(%arg0: i32, %arg1: i32) -> (i32, i32, i32, i32) {
    %c0_i32 = arith.constant 0 : i32
    %c0_i32_0 = arith.constant 0 : i32
    %c0_i32_1 = arith.constant 0 : i32
    return %arg0, %arg1, %c0_i32, %c0_i32_0 : i32, i32, i32, i32
  }
}

</mosaic_0001>

<llo_original>
// kernel: cyclic_shift_3d.1
$region0: #{cyclic_shift_3d.1}
  #allocation0 [shape = 'u32[]', space=smem, size = 0x4, offset = 0x4, fixed_abs, tag = 'smem constant byte address 0x4 - core index']
  #allocation1 [shape = 'u32[144,128]{1,0:T(1,128)}', space=vmem, size = 0x12000, scoped, tag = 'internal scratch']
  %s0 = inlined_call_operand.vmem [shape: f32[2,8,8,128], index: 0, kind: input, shape index: {}]
  %s1 = inlined_call_operand.vmem [shape: f32[2,8,8,128], index: 1, kind: output, shape index: {}]
  %s2 = sld [smem:[#allocation0]]
  $region37: #{cyclic_shift_3d.1} parent=0
    _
  %s4 = ssub.s32 1, %s2
  %s5 = scalar_select 0, %s4, %s2
  loop: start=0, step=1, limit=10
  $region2: #{cyclic_shift_3d.1} parent=0 // loop_pre_header
    _
  $region3: #{cyclic_shift_3d.1} parent=0 // loop_header
    %s7 = sphi 0, %s11
    %p8 = scmp.ge.s32.totalorder %s7, 10
    %s14 = sphi 0, %s26
    %s15 = sphi 0, %s22
    %s16 = sphi 0, %s14
    %s17 = sphi 0, %s15
    %s18 = sphi 0, %s16
    %s19 = sphi 0, %s17
    %s57 = sphi 0, %s59
    %s60 = sphi 0, %s57
    %s61 = sphi 0, %s60
    %s77 = sphi 0, %s61
    %s85 = sphi 0, %s87
    %s88 = sphi 0, %s85
    %s89 = sphi 0, %s88
    %s105 = sphi 0, %s89
  $region4: #{cyclic_shift_3d.1} parent=0 // loop_header_branch
    %10 = sbr.rel (%p8) target = $region8
  $region5: #{cyclic_shift_3d.1} parent=0 // loop_body
    %s12 = ssub.s32 %s7, 1
    %s13 = ssub.s32 %s7, 2
    %s20 = sadd.s32 1, %s15
    %p21 = scmp.ge.s32.totalorder %s20, 4
    %s22 = scalar_select %p21, 0, %s20
    %s23 = sadd.s32 1, %s14
    %s24 = scalar_select %p21, %s23, %s14
    %p25 = scmp.ge.s32.totalorder %s24, 2
    %s26 = scalar_select %p25, 0, %s24
    %s27 = sadd.s32 %s15, 1
    %p28 = scmp.lt.s32.totalorder %s27, 0
    %s29 = ssub.s32 0, %s27
    %s30 = scalar_select %p28, %s29, %s27
    %s31 = sand.u32 %s30, 3
    %s32 = ssub.s32 0, %s31
    %s33 = scalar_select %p28, %s32, %s31
    %p34 = scmp.ne.s32.totalorder %s33, 0
    %p35 = scmp.lt.s32.totalorder %s33, 0
    %p36 = pnand %p35, %p34
    %p37 = pneg %p36
    %s38 = sadd.s32 %s33, 4
    %s39 = scalar_select %p37, %s38, %s33
    %s40 = sadd.s32 %s22, 1
    %p41 = scmp.lt.s32.totalorder %s40, 0
    %s42 = ssub.s32 0, %s40
    %s43 = scalar_select %p41, %s42, %s40
    %s44 = sand.u32 %s43, 3
    %s45 = ssub.s32 0, %s44
    %s46 = scalar_select %p41, %s45, %s44
    %p47 = scmp.ne.s32.totalorder %s46, 0
    %p48 = scmp.lt.s32.totalorder %s46, 0
    %p49 = pnand %p48, %p47
    %p50 = pneg %p49
    %s51 = sadd.s32 %s46, 4
    %s52 = scalar_select %p50, %s51, %s46
    %s53 = ssub.s32 %s14, %s26
    %s54 = ssub.s32 %s39, %s52
    %s55 = sor.u32 %s53, %s54
    %p56 = scmp.eq.s32.totalorder %s55, 0
    %s58 = sadd.s32 %s57, 1
    %s59 = scalar_select %p56, %s57, %s58
    %p62 = pneg %p56
    %p63 = scmp.eq.s32.totalorder %s7, 7
    %p64 = por %p62, %p63
    %p65 = scmp.ne.s32.totalorder %s57, %s60
    %p66 = scmp.eq.s32.totalorder %s7, 0
    %p67 = por %p65, %p66
    %p68 = scmp.ne.s32.totalorder %s57, %s60
    %p69 = scmp.eq.s32.totalorder %s12, 7
    %p70 = por %p68, %p69
    %p71 = scmp.ne.s32.totalorder %s60, %s61
    %p72 = scmp.eq.s32.totalorder %s12, 0
    %p73 = por %p71, %p72
    %p74 = scmp.ne.s32.totalorder %s60, %s61
    %p75 = scmp.eq.s32.totalorder %s13, 7
    %p76 = por %p74, %p75
    %p78 = scmp.ne.s32.totalorder %s61, %s77
    %p79 = scmp.eq.s32.totalorder %s13, 0
    %p80 = por %p78, %p79
    %s81 = ssub.s32 %s14, %s26
    %s82 = ssub.s32 %s15, %s22
    %s83 = sor.u32 %s81, %s82
    %p84 = scmp.eq.s32.totalorder %s83, 0
    %s86 = sadd.s32 %s85, 1
    %s87 = scalar_select %p84, %s85, %s86
    %p90 = pneg %p84
    %p91 = scmp.eq.s32.totalorder %s7, 7
    %p92 = por %p90, %p91
    %p93 = scmp.ne.s32.totalorder %s85, %s88
    %p94 = scmp.eq.s32.totalorder %s7, 0
    %p95 = por %p93, %p94
    %p96 = scmp.ne.s32.totalorder %s85, %s88
    %p97 = scmp.eq.s32.totalorder %s12, 7
    %p98 = por %p96, %p97
    %p99 = scmp.ne.s32.totalorder %s88, %s89
    %p100 = scmp.eq.s32.totalorder %s12, 0
    %p101 = por %p99, %p100
    %p102 = scmp.ne.s32.totalorder %s88, %s89
    %p103 = scmp.eq.s32.totalorder %s13, 7
    %p104 = por %p102, %p103
    %p106 = scmp.ne.s32.totalorder %s89, %s105
    %p107 = scmp.eq.s32.totalorder %s13, 0
    %p108 = por %p106, %p107
    %p109 = scmp.le.s32.totalorder 1, %s7
    %p110 = scmp.lt.s32.totalorder %s7, 9
    %p111 = pnand %p109, %p110
    %p112 = pneg %p111
    // Predicated region
    $region9: #{cyclic_shift_3d.1} parent=5 // pred_check
      _
    $region10: #{cyclic_shift_3d.1} parent=5 // pred_check_branch
      %114 = sbr.rel (%p111) target = $region12
    $region11: #{cyclic_shift_3d.1} parent=5 // pred_region
      %s115 = ssub.s32 %s7, 1
    $region12: #{cyclic_shift_3d.1} parent=5 // pred_fallthru
      _
    %p116 = scmp.lt.s32.totalorder %s7, 8
    // Predicated region
    $region13: #{cyclic_shift_3d.1} parent=5 // pred_check
      %p117 = pneg %p116
    $region14: #{cyclic_shift_3d.1} parent=5 // pred_check_branch
      %119 = sbr.rel (%p117) target = $region16
    $region15: #{cyclic_shift_3d.1} parent=5 // pred_region
      // Predicated region
      $region17: #{cyclic_shift_3d.1} parent=15 // pred_check
        %p120 = pneg %p67
      $region18: #{cyclic_shift_3d.1} parent=15 // pred_check_branch
        %122 = sbr.rel (%p120) target = $region20
      $region19: #{cyclic_shift_3d.1} parent=15 // pred_region
        %s123 = sadd.s32 %s15, 1
        %p124 = scmp.lt.s32.totalorder %s123, 0
        %s125 = ssub.s32 0, %s123
        %s126 = scalar_select %p124, %s125, %s123
        %s127 = sand.u32 %s126, 3
        %s128 = ssub.s32 0, %s127
        %s129 = scalar_select %p124, %s128, %s127
        %p130 = scmp.ne.s32.totalorder %s129, 0
        %p131 = scmp.lt.s32.totalorder %s129, 0
        %p132 = pnand %p131, %p130
        %p133 = pneg %p132
        %s134 = sadd.s32 %s129, 4
        %s135 = scalar_select %p133, %s134, %s129
        %s136 = smul.u32 2, %s135
        %p137 = scmp.lt.s32.totalorder %s14, 1
        %s138 = scalar_select %p137, %s14, 1
        %p139 = scmp.lt.s32.totalorder %s136, 7
        %s140 = scalar_select %p139, %s136, 7
        %s141 = smul.addr %s138, 8
        %s142 = sadd.s32 %s140, %s141
        %s143 = smul.addr %s142, 8
        %s144 = scalar_lea.vmem %s0, %s143
        %s145 = sadd.s32 %s15, 1
        %p146 = scmp.lt.s32.totalorder %s145, 0
        %s147 = ssub.s32 0, %s145
        %s148 = scalar_select %p146, %s147, %s145
        %s149 = sand.u32 %s148, 3
        %s150 = ssub.s32 0, %s149
        %s151 = scalar_select %p146, %s150, %s149
        %p152 = scmp.ne.s32.totalorder %s151, 0
        %p153 = scmp.lt.s32.totalorder %s151, 0
        %p154 = pnand %p153, %p152
        %p155 = pneg %p154
        %s156 = sadd.s32 %s151, 4
        %s157 = scalar_select %p155, %s156, %s151
        %s158 = smul.u32 2, %s157
      $region20: #{cyclic_shift_3d.1} parent=15 // pred_fallthru
        _
    $region16: #{cyclic_shift_3d.1} parent=5 // pred_fallthru
      _
    %p159 = scmp.le.s32.totalorder 1, %s7
    %p160 = scmp.lt.s32.totalorder %s7, 9
    %p161 = pnand %p159, %p160
    %p162 = pneg %p161
    // Predicated region
    $region21: #{cyclic_shift_3d.1} parent=5 // pred_check
      _
    $region22: #{cyclic_shift_3d.1} parent=5 // pred_check_branch
      %164 = sbr.rel (%p161) target = $region24
    $region23: #{cyclic_shift_3d.1} parent=5 // pred_region
      %s165 = ssub.s32 %s7, 1
      %s166 = sadd.s32 %s17, 1
      %p167 = scmp.lt.s32.totalorder %s166, 0
      %s168 = ssub.s32 0, %s166
      %s169 = scalar_select %p167, %s168, %s166
      %s170 = sand.u32 %s169, 3
      %s171 = ssub.s32 0, %s170
      %s172 = scalar_select %p167, %s171, %s170
      %p173 = scmp.ne.s32.totalorder %s172, 0
      %p174 = scmp.lt.s32.totalorder %s172, 0
      %p175 = pnand %p174, %p173
      %p176 = pneg %p175
      %s177 = sadd.s32 %s172, 4
      %s178 = scalar_select %p176, %s177, %s172
      %s179 = smul.u32 2, %s178
      %p180 = scmp.lt.s32.totalorder %s16, 1
      %s181 = scalar_select %p180, %s16, 1
      %p182 = scmp.lt.s32.totalorder %s179, 7
      %s183 = scalar_select %p182, %s179, 7
      %s184 = smul.addr %s181, 8
      %s185 = sadd.s32 %s183, %s184
      %s186 = smul.addr %s185, 8
      %s187 = scalar_lea.vmem %s0, %s186
      %p188 = pneg %p73
      %p189 = pneg %p70
      %p190 = pneg %p101
      %p191 = pneg %p98
      %s192 = smul.u32 2, %s17
      %p193 = scmp.lt.s32.totalorder %s16, 1
      %s194 = scalar_select %p193, %s16, 1
      %p195 = scmp.lt.s32.totalorder %s192, 7
      %s196 = scalar_select %p195, %s192, 7
      %s197 = smul.addr %s194, 8
      %s198 = sadd.s32 %s196, %s197
      %s199 = smul.addr %s198, 8
      %s200 = scalar_lea.vmem %s1, %s199
      %s201 = sadd.s32 %s17, 1
      %p202 = scmp.lt.s32.totalorder %s201, 0
      %s203 = ssub.s32 0, %s201
      %s204 = scalar_select %p202, %s203, %s201
      %s205 = sand.u32 %s204, 3
      %s206 = ssub.s32 0, %s205
      %s207 = scalar_select %p202, %s206, %s205
      %p208 = scmp.ne.s32.totalorder %s207, 0
      %p209 = scmp.lt.s32.totalorder %s207, 0
      %p210 = pnand %p209, %p208
      %p211 = pneg %p210
      %s212 = sadd.s32 %s207, 4
      %s213 = scalar_select %p211, %s212, %s207
      %s214 = smul.u32 2, %s213
      %p215 = scmp.lt.s32.totalorder %s16, 1
      %s216 = scalar_select %p215, %s16, 1
      %p217 = scmp.lt.s32.totalorder %s214, 7
      %s218 = scalar_select %p217, %s214, 7
      %s219 = smul.addr %s216, 8
      %s220 = sadd.s32 %s218, %s219
      %s221 = smul.addr %s220, 8
      %s222 = scalar_lea.vmem %s0, %s221
      %s223 = sadd.s32 %s17, 1
      %p224 = scmp.lt.s32.totalorder %s223, 0
      %s225 = ssub.s32 0, %s223
      %s226 = scalar_select %p224, %s225, %s223
      %s227 = sand.u32 %s226, 3
      %s228 = ssub.s32 0, %s227
      %s229 = scalar_select %p224, %s228, %s227
      %p230 = scmp.ne.s32.totalorder %s229, 0
      %p231 = scmp.lt.s32.totalorder %s229, 0
      %p232 = pnand %p231, %p230
      %p233 = pneg %p232
      %s234 = sadd.s32 %s229, 4
      %s235 = scalar_select %p233, %s234, %s229
      %s236 = smul.u32 2, %s235
      %s237 = smul.u32 2, %s17
      %p238 = scmp.lt.s32.totalorder %s16, 1
      %s239 = scalar_select %p238, %s16, 1
      %p240 = scmp.lt.s32.totalorder %s237, 7
      %s241 = scalar_select %p240, %s237, 7
      %s242 = smul.addr %s239, 8
      %s243 = sadd.s32 %s241, %s242
      %s244 = smul.addr %s243, 8
      %s245 = scalar_lea.vmem %s1, %s244
      %s246 = smul.u32 2, %s17
      %v247 = vld [vmem:[%s222] sm:$0xff]
      %v248 = vrot.slane %v247, 2
      %249 = vrot.lane.b32.xlu0 %v248, 96
      %v250 = vpop.permute.xlu0 %249
      %251 = vst [vmem:[%s245] sm:$0xff] %v250
      %s252 = scalar_lea.vmem %s222, 8
      %v253 = vld [vmem:[%s252] sm:$0xff]
      %v254 = vrot.slane %v253, 2
      %255 = vrot.lane.b32.xlu0 %v254, 96
      %v256 = vpop.permute.xlu0 %255
      %s257 = scalar_lea.vmem %s245, 8
      %258 = vst [vmem:[%s257] sm:$0xff] %v256
      %s259 = smul.u32 2, %s17
      %p260 = scmp.lt.s32.totalorder %s16, 1
      %s261 = scalar_select %p260, %s16, 1
      %p262 = scmp.lt.s32.totalorder %s259, 7
      %s263 = scalar_select %p262, %s259, 7
      %s264 = smul.addr %s261, 8
      %s265 = sadd.s32 %s263, %s264
      %s266 = smul.addr %s265, 8
      %s267 = scalar_lea.vmem %s1, %s266
      // Predicated region
      $region25: #{cyclic_shift_3d.1} parent=23 // pred_check
        %p268 = pneg %p98
      $region26: #{cyclic_shift_3d.1} parent=23 // pred_check_branch
        %270 = sbr.rel (%p268) target = $region28
      $region27: #{cyclic_shift_3d.1} parent=23 // pred_region
        %s271 = smul.u32 2, %s17
      $region28: #{cyclic_shift_3d.1} parent=23 // pred_fallthru
        _
    $region24: #{cyclic_shift_3d.1} parent=5 // pred_fallthru
      _
    %p272 = scmp.le.s32.totalorder 2, %s7
    // Predicated region
    $region29: #{cyclic_shift_3d.1} parent=5 // pred_check
      %p273 = pneg %p272
    $region30: #{cyclic_shift_3d.1} parent=5 // pred_check_branch
      %275 = sbr.rel (%p273) target = $region32
    $region31: #{cyclic_shift_3d.1} parent=5 // pred_region
      %s276 = ssub.s32 %s7, 2
      // Predicated region
      $region33: #{cyclic_shift_3d.1} parent=31 // pred_check
        %p277 = pneg %p104
      $region34: #{cyclic_shift_3d.1} parent=31 // pred_check_branch
        %279 = sbr.rel (%p277) target = $region36
      $region35: #{cyclic_shift_3d.1} parent=31 // pred_region
        %s280 = smul.u32 2, %s19
        %p281 = scmp.lt.s32.totalorder %s18, 1
        %s282 = scalar_select %p281, %s18, 1
        %p283 = scmp.lt.s32.totalorder %s280, 7
        %s284 = scalar_select %p283, %s280, 7
        %s285 = smul.addr %s282, 8
        %s286 = sadd.s32 %s284, %s285
        %s287 = smul.addr %s286, 8
        %s288 = scalar_lea.vmem %s1, %s287
      $region36: #{cyclic_shift_3d.1} parent=31 // pred_fallthru
        _
    $region32: #{cyclic_shift_3d.1} parent=5 // pred_fallthru
      _
  $region6: #{cyclic_shift_3d.1} parent=0 // loop_footer
    %s11 = sadd.s32 1, %s7
  $region7: #{cyclic_shift_3d.1} parent=0 // loop_footer_branch
    %6 = sbr.rel target = $region3
  $region8: #{cyclic_shift_3d.1} parent=0 // loop_exit
    _

</llo_original>
